<compile_context>
chip_gen: v6e
topology: v6e:2x2x1
jax: 0.10.0
libtpu: 0.0.40
codegen_flags: <defaults>
</compile_context>

<pallas_src>
import math

import jax
import jax.numpy as jnp
import numpy as np
from jax.experimental import pallas as pl
from jax.experimental.pallas import tpu as pltpu


# ----------------------------------------------------------------------------
# BlockSpec helpers
# ----------------------------------------------------------------------------
def _full_vmem_spec(shape):
    zeros = tuple(0 for _ in shape)
    return pl.BlockSpec(shape, lambda i, _z=zeros: _z)


# Whole-array SMEM placement for tiny per-batch scalars (no blocking).
_SMEM_SPEC = pl.BlockSpec(memory_space=pltpu.MemorySpace.SMEM)


# ----------------------------------------------------------------------------
# Kernel 1: bilinear resize (align_corners=False) — both matmuls fused
# ----------------------------------------------------------------------------
def bilinear_resize_matrix(in_size, out_size):
    scale = in_size / out_size
    i = np.arange(out_size)
    src = (i + 0.5) * scale - 0.5
    src = np.maximum(src, 0.0)  # PyTorch clamps negative source coords to 0
    i0 = np.minimum(np.floor(src).astype(np.int64), in_size - 1)
    i1 = np.minimum(i0 + 1, in_size - 1)
    w1 = (src - i0).astype(np.float32)
    w0 = (1.0 - w1).astype(np.float32)
    W = np.zeros((out_size, in_size), dtype=np.float32)
    np.add.at(W, (i, i0), w0)
    np.add.at(W, (i, i1), w1)
    return jnp.asarray(W)


def _make_resize_kernel(n_imgs):
    def kernel(x_ref, wh_ref, wwt_ref, o_ref):
        wh = wh_ref[...]      # (out_h, H)
        wwt = wwt_ref[...]    # (W, out_w)  (already transposed on host once)
        # static unroll over images: all intermediates stay in VMEM/vregs
        for i in range(n_imgs):
            rows = jnp.dot(wh, x_ref[i], preferred_element_type=jnp.float32)
            o_ref[i] = jnp.dot(rows, wwt, preferred_element_type=jnp.float32)
    return kernel


def bilinear_resize_nchw(x, out_h, out_w):
    B, C, H, W = x.shape
    wh = bilinear_resize_matrix(H, out_h)          # (out_h, H)
    wwt = bilinear_resize_matrix(W, out_w).T       # (W, out_w)
    x3 = x.reshape(B * C, H, W).astype(jnp.float32)
    out = pl.pallas_call(
        _make_resize_kernel(B * C),
        out_shape=jax.ShapeDtypeStruct((B * C, out_h, out_w), jnp.float32),
        grid=(1,),
        in_specs=[_full_vmem_spec((B * C, H, W)),
                  _full_vmem_spec((out_h, H)),
                  _full_vmem_spec((W, out_w))],
        out_specs=_full_vmem_spec((B * C, out_h, out_w)),
    )(x3, wh, wwt)
    return out.reshape(B, C, out_h, out_w)


# ----------------------------------------------------------------------------
# Kernel 2: fused VAE-encode + add_noise + tiny UNet + CFG + SDS loss
# ----------------------------------------------------------------------------
def _make_sds_kernel(*, B, T, lc, D, S, do_cfg, guidance_scale, grad_scale,
                     variance_preserving, scaling_factor):
    fmax = float(np.finfo(np.float32).max)
    fmin = float(np.finfo(np.float32).min)
    inv_sqrt_d = 1.0 / math.sqrt(D)
    mm_dtype = jnp.bfloat16  # bf16 MXU operands, f32 accumulation (v6e/v7x)

    def mm(a, b):
        return jnp.dot(a.astype(mm_dtype), b.astype(mm_dtype),
                       preferred_element_type=jnp.float32)

    def mm_nt(a, b):
        # a @ b.T without materializing a transpose (contract last dims).
        return jax.lax.dot_general(
            a.astype(mm_dtype), b.astype(mm_dtype),
            dimension_numbers=(((1,), (1,)), ((), ())),
            preferred_element_type=jnp.float32)

    def kernel(ac_ref,                                   # SMEM (B,) alphas_cumprod[t]
               patches_ref, eps_ref, noise_ref, tsin_ref, ctx_ref,
               wm_ref, wlv_ref, bm_ref, blv_ref,
               wt_ref, bt_ref, win_ref, bin_ref,
               wq_ref, wk_ref, wv_ref, wo_ref, wout_ref, bout_ref,
               lat_ref, lnoisy_ref, pred_ref, diff_ref, loss_ref):
        # ---- fused VAE encode: (2x-1) -> patchify matmul -> reparameterize ----
        xp = 2.0 * patches_ref[...] - 1.0                          # (B*T, C*p*p)
        mean = mm(xp, wm_ref[...]) + bm_ref[...]                   # (B*T, lc)
        logvar = mm(xp, wlv_ref[...]) + blv_ref[...]               # (B*T, lc)
        lat2d = (mean + jnp.exp(0.5 * logvar) * eps_ref[...]) * scaling_factor

        # ---- timestep-embedding projection (shared by both CFG branches) ----
        t_proj = jax.nn.silu(mm(tsin_ref[...], wt_ref[...]) + bt_ref[...])  # (B, D)

        w_in = win_ref[...]
        b_in = bin_ref[...]
        w_q = wq_ref[...]
        w_k = wk_ref[...]
        w_v = wv_ref[...]
        w_o = wo_ref[...]
        w_out = wout_ref[...]
        b_out = bout_ref[...]

        for b in range(B):                  # static unroll; no HBM traffic inside
            lat_b = lat2d[b * T:(b + 1) * T, :]                    # (T, lc)
            lat_ref[b] = lat_b
            nz_b = noise_ref[b]                                    # (T, lc)

            # scheduler.add_noise with per-batch scalars straight from SMEM
            ac = ac_ref[b]
            ln_b = jnp.sqrt(ac) * lat_b + jnp.sqrt(1.0 - ac) * nz_b
            lnoisy_ref[b] = ln_b

            # UNet trunk (identical for uncond/text branches -> compute once)
            lat_in = ln_b if do_cfg else lat_b
            h = mm(lat_in, w_in) + b_in + t_proj[b:b + 1]          # (T, D)
            q = mm(h, w_q)                                         # (T, D)

            def branch(ctx_nd):                                    # ctx_nd: (S, D)
                k = mm(ctx_nd, w_k)
                v = mm(ctx_nd, w_v)
                s = mm_nt(q, k) * inv_sqrt_d                       # (T, S), no k.T
                s = s - jnp.max(s, axis=-1, keepdims=True)
                p = jnp.exp(s)
                p = p * pl.reciprocal(jnp.sum(p, axis=-1, keepdims=True),
                                      approx=True)
                a = mm(p, v)                                       # (T, D)
                h2 = jax.nn.silu(h + mm(a, w_o))
                return mm(h2, w_out) + b_out                       # (T, lc)

            if do_cfg:
                u = branch(ctx_ref[b])
                txt = branch(ctx_ref[B + b])
                pred = u + guidance_scale * (txt - u)
            else:
                pred = branch(ctx_ref[b])

            # SDS loss (nan -> 0, +/-inf clipped, matching torch.nan_to_num)
            diff = pred - nz_b
            one_m = 1.0 - ac
            # non-VP weight (1-ac)*sqrt((1-ac)^2) == (1-ac)^2 for ac in [0,1]
            w_sds = one_m if variance_preserving else one_m * one_m
            loss = grad_scale * w_sds * diff
            loss = jnp.where(jnp.isnan(loss), jnp.float32(0.0), loss)
            loss = jnp.clip(loss, fmin, fmax)

            pred_ref[b] = pred
            diff_ref[b] = diff
            loss_ref[b] = loss

    return kernel


# ----------------------------------------------------------------------------
# DiffusionWrapper (synthetic tiny VAE / UNet, real SDS math)
# ----------------------------------------------------------------------------
class DiffusionWrapperPallas:
    def __init__(
        self,
        grad_scale=1.0,
        t_range=(0.02, 0.98),
        variance_preserving=False,
        img_channels=3,
        latent_channels=4,
        patch=8,
        hidden=32,
        seq_len=8,
        scaling_factor=0.18215,
        param_seed=42,
    ):
        self.grad_scale = float(grad_scale)
        self.variance_preserving = variance_preserving
        self.img_channels = img_channels
        self.latent_channels = latent_channels
        self.patch = patch
        self.hidden = hidden
        self.seq_len = seq_len
        self.scaling_factor = float(scaling_factor)

        # DPMSolverMultistepScheduler (SD 2.1): scaled_linear beta schedule
        self.num_timesteps = 1000
        betas = jnp.linspace(0.00085 ** 0.5, 0.012 ** 0.5, self.num_timesteps,
                             dtype=jnp.float32) ** 2
        self.alphas_cumprod = jnp.cumprod(1.0 - betas)
        self.min_step = int(self.num_timesteps * t_range[0])
        self.max_step = int(self.num_timesteps * t_range[1]) + 1

        # Deterministic synthetic parameters (stand-ins for SD weights).
        keys = jax.random.split(jax.random.PRNGKey(param_seed), 12)
        D, C, lc, p = hidden, img_channels, latent_channels, patch
        s = 0.05
        nrm = lambda k, shp: s * jax.random.normal(k, shp, jnp.float32)
        vae_w = nrm(keys[0], (C * p * p, 2 * lc))       # patchify "conv"
        vae_b = nrm(keys[1], (2 * lc,))
        # split mean / logvar columns once on host -> no in-kernel lane slicing
        self.w_mean = vae_w[:, :lc]
        self.w_logvar = vae_w[:, lc:]
        self.b_mean = vae_b[:lc].reshape(1, lc)
        self.b_logvar = vae_b[lc:].reshape(1, lc)
        self.w_time = nrm(keys[2], (D, D))
        self.b_time = nrm(keys[3], (1, D))
        self.w_in = nrm(keys[4], (lc, D))
        self.b_in = nrm(keys[5], (1, D))
        self.w_q = nrm(keys[6], (D, D))
        self.w_k = nrm(keys[7], (D, D))
        self.w_v = nrm(keys[8], (D, D))
        self.w_o = nrm(keys[9], (D, D))
        self.w_out = nrm(keys[10], (D, lc))
        self.b_out = nrm(keys[11], (1, lc))
        print("[INFO] loaded synthetic stable diffusion stand-in model.")

    # -- forward --------------------------------------------------------------
    def forward(self, pred_rgb, key, prompt=None, height=None, width=None,
                guidance_scale=7.5, return_dict=True):
        outputs = {}
        do_cfg = float(guidance_scale) > 1.0
        B = pred_rgb.shape[0]
        C = self.img_channels
        lc = self.latent_channels
        D = self.hidden
        p = self.patch
        k_prompt, k_t, k_noise, k_vae = jax.random.split(key, 4)

        # TODO(synk): tokenizer/CLIP text encoder not translatable; synthesize
        # deterministic prompt embeddings with layout [uncond ; cond] -> (2B,S,D).
        nemb = 2 * B if do_cfg else B
        prompt_embedding = jax.random.normal(
            k_prompt, (nemb, self.seq_len, D), jnp.float32)

        # Kernel 1: fused bilinear resize (one launch, no intermediate in HBM)
        pred_rgb_resize = bilinear_resize_nchw(pred_rgb, height, width)
        outputs["pred_rgb"] = pred_rgb_resize

        # host-side patch layout (single tiny XLA transpose of ~24 KB)
        Hp, Wp = height // p, width // p
        T = Hp * Wp
        patches = pred_rgb_resize.reshape(B, C, Hp, p, Wp, p)
        patches = jnp.transpose(patches, (0, 2, 4, 1, 3, 5)).reshape(B * T, C * p * p)

        # sampling / scheduler scalars (host; tiny), SMEM-bound in the kernel
        t = jax.random.randint(k_t, (B,), self.min_step, self.max_step)
        ac_t = self.alphas_cumprod[t].astype(jnp.float32)          # (B,)
        eps = jax.random.normal(k_vae, (B * T, lc), jnp.float32)
        noise = jax.random.normal(k_noise, (B, T, lc), jnp.float32)

        # sinusoidal timestep features (projection itself is fused in-kernel)
        half = D // 2
        freqs = jnp.exp(-math.log(10000.0)
                        * jnp.arange(half, dtype=jnp.float32) / half)
        args = t.astype(jnp.float32)[:, None] * freqs[None, :]
        t_sin = jnp.concatenate([jnp.sin(args), jnp.cos(args)], axis=-1)  # (B, D)

        # Kernel 2: fused VAE encode + add_noise + UNet + CFG + SDS
        kernel = _make_sds_kernel(
            B=B, T=T, lc=lc, D=D, S=self.seq_len, do_cfg=do_cfg,
            guidance_scale=float(guidance_scale), grad_scale=self.grad_scale,
            variance_preserving=self.variance_preserving,
            scaling_factor=self.scaling_factor)

        vmem_inputs = [patches, eps, noise, t_sin, prompt_embedding,
                       self.w_mean, self.w_logvar, self.b_mean, self.b_logvar,
                       self.w_time, self.b_time, self.w_in, self.b_in,
                       self.w_q, self.w_k, self.w_v, self.w_o,
                       self.w_out, self.b_out]
        in_specs = [_SMEM_SPEC] + [_full_vmem_spec(a.shape) for a in vmem_inputs]
        out_sds = jax.ShapeDtypeStruct((B, T, lc), jnp.float32)

        lat3, lnoisy3, pred3, diff3, loss3 = pl.pallas_call(
            kernel,
            out_shape=(out_sds,) * 5,
            grid=(1,),
            in_specs=in_specs,
            out_specs=tuple(_full_vmem_spec((B, T, lc)) for _ in range(5)),
        )(ac_t, *vmem_inputs)

        to_nchw = lambda a: jnp.transpose(a.reshape(B, Hp, Wp, lc), (0, 3, 1, 2))
        outputs["latents"] = to_nchw(lat3)
        outputs["latenst_noisy"] = to_nchw(lnoisy3)   # key typo matches reference
        outputs["noise_pred"] = to_nchw(pred3)
        outputs["difference"] = to_nchw(diff3)
        loss = to_nchw(loss3)

        if return_dict:
            return loss, outputs
        return loss


if __name__ == "__main__":
    key = jax.random.PRNGKey(0)
    k_x, k_fwd = jax.random.split(key)
    # pred_rgb: (B=2, C=3, H=16, W=16), resized to 32x32 -> latents (2, 4, 4, 4)
    pred_rgb = jax.random.uniform(k_x, (2, 3, 16, 16), jnp.float32)

    model = DiffusionWrapperPallas()
    loss, outputs = model.forward(pred_rgb, k_fwd, prompt="a photo of a cat",
                                  height=32, width=32, guidance_scale=7.5)
    jax.block_until_ready(loss)
    jax.block_until_ready(outputs)
    assert loss.shape == outputs["latents"].shape == (2, 4, 4, 4)
    assert outputs["pred_rgb"].shape == (2, 3, 32, 32)
    assert bool(jnp.all(jnp.isfinite(loss)))
    print("KERNEL_OK")
</pallas_src>

<mosaic_0001>
module attributes {stable_mosaic.version = 11 : i64} {
  func.func @kernel(%arg0: i32, %arg1: memref<6x16x16xf32, #tpu.memory_space<vmem>>, %arg2: memref<32x16xf32, #tpu.memory_space<vmem>>, %arg3: memref<16x32xf32, #tpu.memory_space<vmem>>, %arg4: memref<6x32x32xf32, #tpu.memory_space<vmem>>) attributes {dimension_semantics = [#tpu.dimension_semantics<arbitrary>], iteration_bounds = array<i64: 1>, scalar_prefetch = 0 : i64, scratch_operands = 0 : i64, tpu.core_type = #tpu.core_type<tc>, window_params = [{pipeline_mode = #tpu.pipeline_mode<synchronous>, transform_indices = @transform_0, window_bounds = array<i64: 6, 16, 16>}, {pipeline_mode = #tpu.pipeline_mode<synchronous>, transform_indices = @transform_1, window_bounds = array<i64: 32, 16>}, {pipeline_mode = #tpu.pipeline_mode<synchronous>, transform_indices = @transform_2, window_bounds = array<i64: 16, 32>}, {pipeline_mode = #tpu.pipeline_mode<synchronous>, transform_indices = @transform_3, window_bounds = array<i64: 6, 32, 32>}]} {
    %c0 = arith.constant 0 : index
    %c0_0 = arith.constant 0 : index
    %0 = vector.load %arg2[%c0, %c0_0] : memref<32x16xf32, #tpu.memory_space<vmem>>, vector<32x16xf32>
    %c0_1 = arith.constant 0 : index
    %c0_2 = arith.constant 0 : index
    %1 = vector.load %arg3[%c0_1, %c0_2] : memref<16x32xf32, #tpu.memory_space<vmem>>, vector<16x32xf32>
    %c0_3 = arith.constant 0 : index
    %c0_4 = arith.constant 0 : index
    %c0_5 = arith.constant 0 : index
    %2 = vector.load %arg1[%c0_3, %c0_4, %c0_5] : memref<6x16x16xf32, #tpu.memory_space<vmem>>, vector<1x16x16xf32>
    %3 = vector.shape_cast %2 : vector<1x16x16xf32> to vector<16x16xf32>
    %cst = arith.constant dense<0.000000e+00> : vector<32x16xf32>
    %4 = tpu.matmul %0, %3, %cst {dimension_numbers = #tpu.dot_dimension_numbers<[1], [0], [0], [1], [0, 0, 1, 1], [], []>} : vector<32x16xf32>, vector<16x16xf32>, vector<32x16xf32> -> vector<32x16xf32>
    %cst_6 = arith.constant dense<0.000000e+00> : vector<32x32xf32>
    %5 = tpu.matmul %4, %1, %cst_6 {dimension_numbers = #tpu.dot_dimension_numbers<[1], [0], [0], [1], [0, 0, 1, 1], [], []>} : vector<32x16xf32>, vector<16x32xf32>, vector<32x32xf32> -> vector<32x32xf32>
    %c0_7 = arith.constant 0 : index
    %c0_8 = arith.constant 0 : index
    %c0_9 = arith.constant 0 : index
    %6 = vector.load %arg4[%c0_7, %c0_8, %c0_9] : memref<6x32x32xf32, #tpu.memory_space<vmem>>, vector<1x32x32xf32>
    %7 = vector.shape_cast %6 : vector<1x32x32xf32> to vector<32x32xf32>
    %8 = vector.shape_cast %5 : vector<32x32xf32> to vector<1x32x32xf32>
    tpu.vector_store %arg4[%c0_7, %c0_8, %c0_9], %8 {strides = array<i32>} : memref<6x32x32xf32, #tpu.memory_space<vmem>>, vector<1x32x32xf32>,
    %c1 = arith.constant 1 : index
    %c0_10 = arith.constant 0 : index
    %c0_11 = arith.constant 0 : index
    %9 = vector.load %arg1[%c1, %c0_10, %c0_11] : memref<6x16x16xf32, #tpu.memory_space<vmem>>, vector<1x16x16xf32>
    %10 = vector.shape_cast %9 : vector<1x16x16xf32> to vector<16x16xf32>
    %cst_12 = arith.constant dense<0.000000e+00> : vector<32x16xf32>
    %11 = tpu.matmul %0, %10, %cst_12 {dimension_numbers = #tpu.dot_dimension_numbers<[1], [0], [0], [1], [0, 0, 1, 1], [], []>} : vector<32x16xf32>, vector<16x16xf32>, vector<32x16xf32> -> vector<32x16xf32>
    %cst_13 = arith.constant dense<0.000000e+00> : vector<32x32xf32>
    %12 = tpu.matmul %11, %1, %cst_13 {dimension_numbers = #tpu.dot_dimension_numbers<[1], [0], [0], [1], [0, 0, 1, 1], [], []>} : vector<32x16xf32>, vector<16x32xf32>, vector<32x32xf32> -> vector<32x32xf32>
    %c1_14 = arith.constant 1 : index
    %c0_15 = arith.constant 0 : index
    %c0_16 = arith.constant 0 : index
    %13 = vector.load %arg4[%c1_14, %c0_15, %c0_16] : memref<6x32x32xf32, #tpu.memory_space<vmem>>, vector<1x32x32xf32>
    %14 = vector.shape_cast %13 : vector<1x32x32xf32> to vector<32x32xf32>
    %15 = vector.shape_cast %12 : vector<32x32xf32> to vector<1x32x32xf32>
    tpu.vector_store %arg4[%c1_14, %c0_15, %c0_16], %15 {strides = array<i32>} : memref<6x32x32xf32, #tpu.memory_space<vmem>>, vector<1x32x32xf32>,
    %c2 = arith.constant 2 : index
    %c0_17 = arith.constant 0 : index
    %c0_18 = arith.constant 0 : index
    %16 = vector.load %arg1[%c2, %c0_17, %c0_18] : memref<6x16x16xf32, #tpu.memory_space<vmem>>, vector<1x16x16xf32>
    %17 = vector.shape_cast %16 : vector<1x16x16xf32> to vector<16x16xf32>
    %cst_19 = arith.constant dense<0.000000e+00> : vector<32x16xf32>
    %18 = tpu.matmul %0, %17, %cst_19 {dimension_numbers = #tpu.dot_dimension_numbers<[1], [0], [0], [1], [0, 0, 1, 1], [], []>} : vector<32x16xf32>, vector<16x16xf32>, vector<32x16xf32> -> vector<32x16xf32>
    %cst_20 = arith.constant dense<0.000000e+00> : vector<32x32xf32>
    %19 = tpu.matmul %18, %1, %cst_20 {dimension_numbers = #tpu.dot_dimension_numbers<[1], [0], [0], [1], [0, 0, 1, 1], [], []>} : vector<32x16xf32>, vector<16x32xf32>, vector<32x32xf32> -> vector<32x32xf32>
    %c2_21 = arith.constant 2 : index
    %c0_22 = arith.constant 0 : index
    %c0_23 = arith.constant 0 : index
    %20 = vector.load %arg4[%c2_21, %c0_22, %c0_23] : memref<6x32x32xf32, #tpu.memory_space<vmem>>, vector<1x32x32xf32>
    %21 = vector.shape_cast %20 : vector<1x32x32xf32> to vector<32x32xf32>
    %22 = vector.shape_cast %19 : vector<32x32xf32> to vector<1x32x32xf32>
    tpu.vector_store %arg4[%c2_21, %c0_22, %c0_23], %22 {strides = array<i32>} : memref<6x32x32xf32, #tpu.memory_space<vmem>>, vector<1x32x32xf32>,
    %c3 = arith.constant 3 : index
    %c0_24 = arith.constant 0 : index
    %c0_25 = arith.constant 0 : index
    %23 = vector.load %arg1[%c3, %c0_24, %c0_25] : memref<6x16x16xf32, #tpu.memory_space<vmem>>, vector<1x16x16xf32>
    %24 = vector.shape_cast %23 : vector<1x16x16xf32> to vector<16x16xf32>
    %cst_26 = arith.constant dense<0.000000e+00> : vector<32x16xf32>
    %25 = tpu.matmul %0, %24, %cst_26 {dimension_numbers = #tpu.dot_dimension_numbers<[1], [0], [0], [1], [0, 0, 1, 1], [], []>} : vector<32x16xf32>, vector<16x16xf32>, vector<32x16xf32> -> vector<32x16xf32>
    %cst_27 = arith.constant dense<0.000000e+00> : vector<32x32xf32>
    %26 = tpu.matmul %25, %1, %cst_27 {dimension_numbers = #tpu.dot_dimension_numbers<[1], [0], [0], [1], [0, 0, 1, 1], [], []>} : vector<32x16xf32>, vector<16x32xf32>, vector<32x32xf32> -> vector<32x32xf32>
    %c3_28 = arith.constant 3 : index
    %c0_29 = arith.constant 0 : index
    %c0_30 = arith.constant 0 : index
    %27 = vector.load %arg4[%c3_28, %c0_29, %c0_30] : memref<6x32x32xf32, #tpu.memory_space<vmem>>, vector<1x32x32xf32>
    %28 = vector.shape_cast %27 : vector<1x32x32xf32> to vector<32x32xf32>
    %29 = vector.shape_cast %26 : vector<32x32xf32> to vector<1x32x32xf32>
    tpu.vector_store %arg4[%c3_28, %c0_29, %c0_30], %29 {strides = array<i32>} : memref<6x32x32xf32, #tpu.memory_space<vmem>>, vector<1x32x32xf32>,
    %c4 = arith.constant 4 : index
    %c0_31 = arith.constant 0 : index
    %c0_32 = arith.constant 0 : index
    %30 = vector.load %arg1[%c4, %c0_31, %c0_32] : memref<6x16x16xf32, #tpu.memory_space<vmem>>, vector<1x16x16xf32>
    %31 = vector.shape_cast %30 : vector<1x16x16xf32> to vector<16x16xf32>
    %cst_33 = arith.constant dense<0.000000e+00> : vector<32x16xf32>
    %32 = tpu.matmul %0, %31, %cst_33 {dimension_numbers = #tpu.dot_dimension_numbers<[1], [0], [0], [1], [0, 0, 1, 1], [], []>} : vector<32x16xf32>, vector<16x16xf32>, vector<32x16xf32> -> vector<32x16xf32>
    %cst_34 = arith.constant dense<0.000000e+00> : vector<32x32xf32>
    %33 = tpu.matmul %32, %1, %cst_34 {dimension_numbers = #tpu.dot_dimension_numbers<[1], [0], [0], [1], [0, 0, 1, 1], [], []>} : vector<32x16xf32>, vector<16x32xf32>, vector<32x32xf32> -> vector<32x32xf32>
    %c4_35 = arith.constant 4 : index
    %c0_36 = arith.constant 0 : index
    %c0_37 = arith.constant 0 : index
    %34 = vector.load %arg4[%c4_35, %c0_36, %c0_37] : memref<6x32x32xf32, #tpu.memory_space<vmem>>, vector<1x32x32xf32>
    %35 = vector.shape_cast %34 : vector<1x32x32xf32> to vector<32x32xf32>
    %36 = vector.shape_cast %33 : vector<32x32xf32> to vector<1x32x32xf32>
    tpu.vector_store %arg4[%c4_35, %c0_36, %c0_37], %36 {strides = array<i32>} : memref<6x32x32xf32, #tpu.memory_space<vmem>>, vector<1x32x32xf32>,
    %c5 = arith.constant 5 : index
    %c0_38 = arith.constant 0 : index
    %c0_39 = arith.constant 0 : index
    %37 = vector.load %arg1[%c5, %c0_38, %c0_39] : memref<6x16x16xf32, #tpu.memory_space<vmem>>, vector<1x16x16xf32>
    %38 = vector.shape_cast %37 : vector<1x16x16xf32> to vector<16x16xf32>
    %cst_40 = arith.constant dense<0.000000e+00> : vector<32x16xf32>
    %39 = tpu.matmul %0, %38, %cst_40 {dimension_numbers = #tpu.dot_dimension_numbers<[1], [0], [0], [1], [0, 0, 1, 1], [], []>} : vector<32x16xf32>, vector<16x16xf32>, vector<32x16xf32> -> vector<32x16xf32>
    %cst_41 = arith.constant dense<0.000000e+00> : vector<32x32xf32>
    %40 = tpu.matmul %39, %1, %cst_41 {dimension_numbers = #tpu.dot_dimension_numbers<[1], [0], [0], [1], [0, 0, 1, 1], [], []>} : vector<32x16xf32>, vector<16x32xf32>, vector<32x32xf32> -> vector<32x32xf32>
    %c5_42 = arith.constant 5 : index
    %c0_43 = arith.constant 0 : index
    %c0_44 = arith.constant 0 : index
    %41 = vector.load %arg4[%c5_42, %c0_43, %c0_44] : memref<6x32x32xf32, #tpu.memory_space<vmem>>, vector<1x32x32xf32>
    %42 = vector.shape_cast %41 : vector<1x32x32xf32> to vector<32x32xf32>
    %43 = vector.shape_cast %40 : vector<32x32xf32> to vector<1x32x32xf32>
    tpu.vector_store %arg4[%c5_42, %c0_43, %c0_44], %43 {strides = array<i32>} : memref<6x32x32xf32, #tpu.memory_space<vmem>>, vector<1x32x32xf32>,
    return
  }
  func.func @transform_0(%arg0: i32) -> (i32, i32, i32) {
    %c0_i32 = arith.constant 0 : i32
    %c0_i32_0 = arith.constant 0 : i32
    %c0_i32_1 = arith.constant 0 : i32
    %c0_i32_2 = arith.constant 0 : i32
    return %c0_i32, %c0_i32_0, %c0_i32_1 : i32, i32, i32
  }
  func.func @transform_1(%arg0: i32) -> (i32, i32) {
    %c0_i32 = arith.constant 0 : i32
    %c0_i32_0 = arith.constant 0 : i32
    %c0_i32_1 = arith.constant 0 : i32
    return %c0_i32, %c0_i32_0 : i32, i32
  }
  func.func @transform_2(%arg0: i32) -> (i32, i32) {
    %c0_i32 = arith.constant 0 : i32
    %c0_i32_0 = arith.constant 0 : i32
    %c0_i32_1 = arith.constant 0 : i32
    return %c0_i32, %c0_i32_0 : i32, i32
  }
  func.func @transform_3(%arg0: i32) -> (i32, i32, i32) {
    %c0_i32 = arith.constant 0 : i32
    %c0_i32_0 = arith.constant 0 : i32
    %c0_i32_1 = arith.constant 0 : i32
    %c0_i32_2 = arith.constant 0 : i32
    return %c0_i32, %c0_i32_0, %c0_i32_1 : i32, i32, i32
  }
}

</mosaic_0001>

<llo_original>
// kernel: tpu_custom_call.1
$region0: #{tpu_custom_call.1}
  #allocation0 [shape = 'u32[]', space=smem, size = 0x4, offset = 0x4, fixed_abs, tag = 'smem constant byte address 0x4 - core index']
  #allocation1 [shape = 'u32[144,128]{1,0:T(1,128)}', space=vmem, size = 0x12000, scoped, tag = 'internal scratch']
  %s0 = inlined_call_operand.hbm [shape: f32[6,16,16], index: 0, kind: input, shape index: {}]
  %s1 = inlined_call_operand.vmem [shape: f32[32,16], index: 1, kind: input, shape index: {}]
  %s2 = inlined_call_operand.vmem [shape: f32[16,32], index: 2, kind: input, shape index: {}]
  %s3 = inlined_call_operand.hbm [shape: f32[6,32,32], index: 3, kind: output, shape index: {}]
  %s4 = sld [smem:[#allocation0]]
  $region26: #{tpu_custom_call.1} parent=0
    _
  %s6 = ssub.s32 1, %s4
  %s7 = scalar_select 0, %s6, %s4
  $region1: #{tpu_custom_call.1} parent=0
    #allocation2 [shape = 'u8[49152]{0}', space=vmem, size = 0xc000, scoped, tag = 'input window, operand 0, single buffered']
    #allocation3 [shape = 's32[1]{0}', space=sflag, size = 0x4, scoped, tag = 'scoped memory for tpu_custom_call.1']
    #allocation4 [shape = 's32[1]{0}', space=sflag, size = 0x4, scoped, tag = 'scoped memory for tpu_custom_call.1']
    #allocation5 [shape = 'u8[98304]{0}', space=vmem, size = 0x18000, scoped, tag = 'output window, operand 0, single buffered']
    %8 = vsyncpa [#allocation3], 0
    %9 = vsyncpa [#allocation4], 0
    // Predicated region
    $region2: #{tpu_custom_call.1} parent=1 // pred_check
      _
    $region3: #{tpu_custom_call.1} parent=1 // pred_check_branch
      %11 = sbr.rel (0) target = $region5
    $region4: #{tpu_custom_call.1} parent=1 // pred_region
      %s13 = ssub.s32 1536, 1536
      %14 = vsyncadd [#allocation3], %s13
      %s15 = sshll.u32 [#allocation2], 4
      %s16 = int_to_ptr.vmem [resolvable:$true] %s15
      %21 = dma.hbm_to_vmem [thread:$0]  %s0, 1536, %s16, [#allocation3], 128, 128, 8
    $region5: #{tpu_custom_call.1} parent=1 // pred_fallthru
      _
    // Predicated region
    $region6: #{tpu_custom_call.1} parent=1 // pred_check
      _
    $region7: #{tpu_custom_call.1} parent=1 // pred_check_branch
      %23 = sbr.rel (0) target = $region9
    $region8: #{tpu_custom_call.1} parent=1 // pred_region
      _
    $region9: #{tpu_custom_call.1} parent=1 // pred_fallthru
      _
    // Predicated region
    $region10: #{tpu_custom_call.1} parent=1 // pred_check
      _
    $region11: #{tpu_custom_call.1} parent=1 // pred_check_branch
      %25 = sbr.rel (0) target = $region13
    $region12: #{tpu_custom_call.1} parent=1 // pred_region
      _
    $region13: #{tpu_custom_call.1} parent=1 // pred_fallthru
      _
    // Predicated region
    $region14: #{tpu_custom_call.1} parent=1 // pred_check
      _
    $region15: #{tpu_custom_call.1} parent=1 // pred_check_branch
      %27 = sbr.rel (0) target = $region17
    $region16: #{tpu_custom_call.1} parent=1 // pred_region
      %28 = dma.done [#allocation3], 1536
    $region17: #{tpu_custom_call.1} parent=1 // pred_fallthru
      _
    %v29 = vld [vmem:[%s1] sm:$0xff]
    %v30 = vld [vmem:[%s1 + $0x8] sm:$0xff]
    %v31 = vld [vmem:[%s1 + $0x10] sm:$0xff]
    %v32 = vld [vmem:[%s1 + $0x18] sm:$0xff]
    %v33 = vld [vmem:[%s2] sm:$0xff]
    %v34 = vld [vmem:[%s2 + $0x8] sm:$0xff]
    %v35 = vld [vmem:[#allocation2] sm:$0xff]
    %v36 = vld [vmem:[#allocation2 + $0x8] sm:$0xff]
    %vm37 = vcmask 130048
    %v39 = vsel %vm37, %v29, 0
    %v42 = vsel %vm37, %v30, 0
    %v45 = vsel %vm37, %v31, 0
    %v48 = vsel %vm37, %v32, 0
    %50 = vmatprep.subr.mxu0 0.0
    %51 = vmatpush1.msra.mxu0 0.0
    %52 = vmatprep.subr.mxu0 0.0
    %53 = vmatpush1.msra.mxu0 0.0
    %54 = vmatprep.subr.mxu0 0.0
    %55 = vmatpush1.msra.mxu0 0.0
    %56 = vmatprep.subr.mxu0 0.0
    %57 = vmatpush1.msra.mxu0 0.0
    %58 = vmatprep.subr.mxu0 0.0
    %59 = vmatpush1.msra.mxu0 0.0
    %60 = vmatprep.subr.mxu0 0.0
    %61 = vmatpush1.msra.mxu0 0.0
    %62 = vmatprep.subr.mxu0 0.0
    %63 = vmatpush1.msra.mxu0 0.0
    %64 = vmatprep.subr.mxu0 0.0
    %65 = vmatpush1.msra.mxu0 0.0
    %66 = vmatprep.subr.mxu0 0.0
    %67 = vmatpush1.msra.mxu0 0.0
    %68 = vmatprep.subr.mxu0 0.0
    %69 = vmatpush1.msra.mxu0 0.0
    %70 = vmatprep.subr.mxu0 0.0
    %71 = vmatpush1.msra.mxu0 0.0
    %72 = vmatprep.subr.mxu0 0.0
    %73 = vmatpush1.msra.mxu0 0.0
    %74 = vmatprep.subr.mxu0 0.0
    %75 = vmatpush1.msra.mxu0 0.0
    %76 = vmatprep.subr.mxu0 0.0
    %77 = vmatpush1.msra.mxu0 0.0
    %78 = vmatprep.subr.mxu0 0.0
    %79 = vmatpush1.msra.mxu0 %v36
    %80 = vmatprep.subr.mxu0 0.0
    %81 = vmatpush1.msra.mxu0 %v35
    %82 = vmatprep.subr.mxu0 0.0
    %83 = vmatpush2.msra.mxu0 0.0
    %84 = vmatprep.subr.mxu0 0.0
    %85 = vmatpush2.msra.mxu0 0.0
    %86 = vmatprep.subr.mxu0 0.0
    %87 = vmatpush2.msra.mxu0 0.0
    %88 = vmatprep.subr.mxu0 0.0
    %89 = vmatpush2.msra.mxu0 0.0
    %90 = vmatprep.subr.mxu0 0.0
    %91 = vmatpush2.msra.mxu0 0.0
    %92 = vmatprep.subr.mxu0 0.0
    %93 = vmatpush2.msra.mxu0 0.0
    %94 = vmatprep.subr.mxu0 0.0
    %95 = vmatpush2.msra.mxu0 0.0
    %96 = vmatprep.subr.mxu0 0.0
    %97 = vmatpush2.msra.mxu0 0.0
    %98 = vmatprep.subr.mxu0 0.0
    %99 = vmatpush2.msra.mxu0 0.0
    %100 = vmatprep.subr.mxu0 0.0
    %101 = vmatpush2.msra.mxu0 0.0
    %102 = vmatprep.subr.mxu0 0.0
    %103 = vmatpush2.msra.mxu0 0.0
    %104 = vmatprep.subr.mxu0 0.0
    %105 = vmatpush2.msra.mxu0 0.0
    %106 = vmatprep.subr.mxu0 0.0
    %107 = vmatpush2.msra.mxu0 0.0
    %108 = vmatprep.subr.mxu0 0.0
    %109 = vmatpush2.msra.mxu0 0.0
    %110 = vmatprep.subr.mxu0 0.0
    %111 = vmatpush2.msra.mxu0 0.0
    %112 = vmatprep.subr.mxu0 0.0
    %113 = vmatpush2.msra.mxu0 0.0
    %114 = vmatprep.mubr.f32.mxu0 0.0
    %115 = vmatmul.mubr.f32.gmra.mxu0 %v39
    %v116 = vpop.f32.mrf.mxu0
    %v117 = vadd.f32 0.0, %v116
    %v118 = vpop.f32.mrf.mxu0
    %119 = vmatprep.mubr.f32.mxu0 0.0
    %120 = vmatmul.mubr.f32.gmra.mxu0 %v42
    %v121 = vpop.f32.mrf.mxu0
    %v122 = vadd.f32 0.0, %v121
    %v123 = vpop.f32.mrf.mxu0
    %124 = vmatprep.mubr.f32.mxu0 0.0
    %125 = vmatmul.mubr.f32.gmra.mxu0 %v45
    %v126 = vpop.f32.mrf.mxu0
    %v127 = vadd.f32 0.0, %v126
    %v128 = vpop.f32.mrf.mxu0
    %129 = vmatprep.mubr.f32.mxu0 0.0
    %130 = vmatmul.mubr.f32.gmra.mxu0 %v48
    %v131 = vpop.f32.mrf.mxu0
    %v132 = vadd.f32 0.0, %v131
    %v133 = vpop.f32.mrf.mxu0
    %134 = vdwg.mxu0
    %v136 = vsel %vm37, %v117, 0
    %v139 = vsel %vm37, %v122, 0
    %v142 = vsel %vm37, %v127, 0
    %v145 = vsel %vm37, %v132, 0
    %147 = vmatprep.subr.mxu0 0.0
    %148 = vmatpush1.msra.mxu0 0.0
    %149 = vmatprep.subr.mxu0 0.0
    %150 = vmatpush1.msra.mxu0 0.0
    %151 = vmatprep.subr.mxu0 0.0
    %152 = vmatpush1.msra.mxu0 0.0
    %153 = vmatprep.subr.mxu0 0.0
    %154 = vmatpush1.msra.mxu0 0.0
    %155 = vmatprep.subr.mxu0 0.0
    %156 = vmatpush1.msra.mxu0 0.0
    %157 = vmatprep.subr.mxu0 0.0
    %158 = vmatpush1.msra.mxu0 0.0
    %159 = vmatprep.subr.mxu0 0.0
    %160 = vmatpush1.msra.mxu0 0.0
    %161 = vmatprep.subr.mxu0 0.0
    %162 = vmatpush1.msra.mxu0 0.0
    %163 = vmatprep.subr.mxu0 0.0
    %164 = vmatpush1.msra.mxu0 0.0
    %165 = vmatprep.subr.mxu0 0.0
    %166 = vmatpush1.msra.mxu0 0.0
    %167 = vmatprep.subr.mxu0 0.0
    %168 = vmatpush1.msra.mxu0 0.0
    %169 = vmatprep.subr.mxu0 0.0
    %170 = vmatpush1.msra.mxu0 0.0
    %171 = vmatprep.subr.mxu0 0.0
    %172 = vmatpush1.msra.mxu0 0.0
    %173 = vmatprep.subr.mxu0 0.0
    %174 = vmatpush1.msra.mxu0 0.0
    %175 = vmatprep.subr.mxu0 0.0
    %176 = vmatpush1.msra.mxu0 %v34
    %177 = vmatprep.subr.mxu0 0.0
    %178 = vmatpush1.msra.mxu0 %v33
    %179 = vmatprep.subr.mxu0 0.0
    %180 = vmatpush2.msra.mxu0 0.0
    %181 = vmatprep.subr.mxu0 0.0
    %182 = vmatpush2.msra.mxu0 0.0
    %183 = vmatprep.subr.mxu0 0.0
    %184 = vmatpush2.msra.mxu0 0.0
    %185 = vmatprep.subr.mxu0 0.0
    %186 = vmatpush2.msra.mxu0 0.0
    %187 = vmatprep.subr.mxu0 0.0
    %188 = vmatpush2.msra.mxu0 0.0
    %189 = vmatprep.subr.mxu0 0.0
    %190 = vmatpush2.msra.mxu0 0.0
    %191 = vmatprep.subr.mxu0 0.0
    %192 = vmatpush2.msra.mxu0 0.0
    %193 = vmatprep.subr.mxu0 0.0
    %194 = vmatpush2.msra.mxu0 0.0
    %195 = vmatprep.subr.mxu0 0.0
    %196 = vmatpush2.msra.mxu0 0.0
    %197 = vmatprep.subr.mxu0 0.0
    %198 = vmatpush2.msra.mxu0 0.0
    %199 = vmatprep.subr.mxu0 0.0
    %200 = vmatpush2.msra.mxu0 0.0
    %201 = vmatprep.subr.mxu0 0.0
    %202 = vmatpush2.msra.mxu0 0.0
    %203 = vmatprep.subr.mxu0 0.0
    %204 = vmatpush2.msra.mxu0 0.0
    %205 = vmatprep.subr.mxu0 0.0
    %206 = vmatpush2.msra.mxu0 0.0
    %207 = vmatprep.subr.mxu0 0.0
    %208 = vmatpush2.msra.mxu0 0.0
    %209 = vmatprep.subr.mxu0 0.0
    %210 = vmatpush2.msra.mxu0 0.0
    %211 = vmatprep.mubr.f32.mxu0 0.0
    %212 = vmatmul.mubr.f32.gmra.mxu0 %v136
    %v213 = vpop.f32.mrf.mxu0
    %v214 = vadd.f32 0.0, %v213
    %v215 = vpop.f32.mrf.mxu0
    %216 = vmatprep.mubr.f32.mxu0 0.0
    %217 = vmatmul.mubr.f32.gmra.mxu0 %v139
    %v218 = vpop.f32.mrf.mxu0
    %v219 = vadd.f32 0.0, %v218
    %v220 = vpop.f32.mrf.mxu0
    %221 = vmatprep.mubr.f32.mxu0 0.0
    %222 = vmatmul.mubr.f32.gmra.mxu0 %v142
    %v223 = vpop.f32.mrf.mxu0
    %v224 = vadd.f32 0.0, %v223
    %v225 = vpop.f32.mrf.mxu0
    %226 = vmatprep.mubr.f32.mxu0 0.0
    %227 = vmatmul.mubr.f32.gmra.mxu0 %v145
    %v228 = vpop.f32.mrf.mxu0
    %v229 = vadd.f32 0.0, %v228
    %v230 = vpop.f32.mrf.mxu0
    %231 = vdwg.mxu0
    %vm232 = vcmask 261120
    %233 = vst.msk [vmem:[#allocation5] sm:$0xff] %vm232, %v214
    %234 = vst.msk [vmem:[#allocation5 + $0x8] sm:$0xff] %vm232, %v219
    %235 = vst.msk [vmem:[#allocation5 + $0x10] sm:$0xff] %vm232, %v224
    %236 = vst.msk [vmem:[#allocation5 + $0x18] sm:$0xff] %vm232, %v229
    %s237 = scalar_lea.vmem [#allocation2], 16
    %v238 = vld [vmem:[%s237] sm:$0xff]
    %v239 = vld [vmem:[%s237 + $0x8] sm:$0xff]
    %240 = vmatprep.subr.mxu0 0.0
    %241 = vmatpush1.msra.mxu0 0.0
    %242 = vmatprep.subr.mxu0 0.0
    %243 = vmatpush1.msra.mxu0 0.0
    %244 = vmatprep.subr.mxu0 0.0
    %245 = vmatpush1.msra.mxu0 0.0
    %246 = vmatprep.subr.mxu0 0.0
    %247 = vmatpush1.msra.mxu0 0.0
    %248 = vmatprep.subr.mxu0 0.0
    %249 = vmatpush1.msra.mxu0 0.0
    %250 = vmatprep.subr.mxu0 0.0
    %251 = vmatpush1.msra.mxu0 0.0
    %252 = vmatprep.subr.mxu0 0.0
    %253 = vmatpush1.msra.mxu0 0.0
    %254 = vmatprep.subr.mxu0 0.0
    %255 = vmatpush1.msra.mxu0 0.0
    %256 = vmatprep.subr.mxu0 0.0
    %257 = vmatpush1.msra.mxu0 0.0
    %258 = vmatprep.subr.mxu0 0.0
    %259 = vmatpush1.msra.mxu0 0.0
    %260 = vmatprep.subr.mxu0 0.0
    %261 = vmatpush1.msra.mxu0 0.0
    %262 = vmatprep.subr.mxu0 0.0
    %263 = vmatpush1.msra.mxu0 0.0
    %264 = vmatprep.subr.mxu0 0.0
    %265 = vmatpush1.msra.mxu0 0.0
    %266 = vmatprep.subr.mxu0 0.0
    %267 = vmatpush1.msra.mxu0 0.0
    %268 = vmatprep.subr.mxu0 0.0
    %269 = vmatpush1.msra.mxu0 %v239
    %270 = vmatprep.subr.mxu0 0.0
    %271 = vmatpush1.msra.mxu0 %v238
    %272 = vmatprep.subr.mxu0 0.0
    %273 = vmatpush2.msra.mxu0 0.0
    %274 = vmatprep.subr.mxu0 0.0
    %275 = vmatpush2.msra.mxu0 0.0
    %276 = vmatprep.subr.mxu0 0.0
    %277 = vmatpush2.msra.mxu0 0.0
    %278 = vmatprep.subr.mxu0 0.0
    %279 = vmatpush2.msra.mxu0 0.0
    %280 = vmatprep.subr.mxu0 0.0
    %281 = vmatpush2.msra.mxu0 0.0
    %282 = vmatprep.subr.mxu0 0.0
    %283 = vmatpush2.msra.mxu0 0.0
    %284 = vmatprep.subr.mxu0 0.0
    %285 = vmatpush2.msra.mxu0 0.0
    %286 = vmatprep.subr.mxu0 0.0
    %287 = vmatpush2.msra.mxu0 0.0
    %288 = vmatprep.subr.mxu0 0.0
    %289 = vmatpush2.msra.mxu0 0.0
    %290 = vmatprep.subr.mxu0 0.0
    %291 = vmatpush2.msra.mxu0 0.0
    %292 = vmatprep.subr.mxu0 0.0
    %293 = vmatpush2.msra.mxu0 0.0
    %294 = vmatprep.subr.mxu0 0.0
    %295 = vmatpush2.msra.mxu0 0.0
    %296 = vmatprep.subr.mxu0 0.0
    %297 = vmatpush2.msra.mxu0 0.0
    %298 = vmatprep.subr.mxu0 0.0
    %299 = vmatpush2.msra.mxu0 0.0
    %300 = vmatprep.subr.mxu0 0.0
    %301 = vmatpush2.msra.mxu0 0.0
    %302 = vmatprep.subr.mxu0 0.0
    %303 = vmatpush2.msra.mxu0 0.0
    %304 = vmatprep.mubr.f32.mxu0 0.0
    %305 = vmatmul.mubr.f32.gmra.mxu0 %v39
    %v306 = vpop.f32.mrf.mxu0
    %v307 = vadd.f32 0.0, %v306
    %v308 = vpop.f32.mrf.mxu0
    %309 = vmatprep.mubr.f32.mxu0 0.0
    %310 = vmatmul.mubr.f32.gmra.mxu0 %v42
    %v311 = vpop.f32.mrf.mxu0
    %v312 = vadd.f32 0.0, %v311
    %v313 = vpop.f32.mrf.mxu0
    %314 = vmatprep.mubr.f32.mxu0 0.0
    %315 = vmatmul.mubr.f32.gmra.mxu0 %v45
    %v316 = vpop.f32.mrf.mxu0
    %v317 = vadd.f32 0.0, %v316
    %v318 = vpop.f32.mrf.mxu0
    %319 = vmatprep.mubr.f32.mxu0 0.0
    %320 = vmatmul.mubr.f32.gmra.mxu0 %v48
    %v321 = vpop.f32.mrf.mxu0
    %v322 = vadd.f32 0.0, %v321
    %v323 = vpop.f32.mrf.mxu0
    %324 = vdwg.mxu0
    %v326 = vsel %vm37, %v307, 0
    %v329 = vsel %vm37, %v312, 0
    %v332 = vsel %vm37, %v317, 0
    %v335 = vsel %vm37, %v322, 0
    %337 = vmatprep.subr.mxu0 0.0
    %338 = vmatpush1.msra.mxu0 0.0
    %339 = vmatprep.subr.mxu0 0.0
    %340 = vmatpush1.msra.mxu0 0.0
    %341 = vmatprep.subr.mxu0 0.0
    %342 = vmatpush1.msra.mxu0 0.0
    %343 = vmatprep.subr.mxu0 0.0
    %344 = vmatpush1.msra.mxu0 0.0
    %345 = vmatprep.subr.mxu0 0.0
    %346 = vmatpush1.msra.mxu0 0.0
    %347 = vmatprep.subr.mxu0 0.0
    %348 = vmatpush1.msra.mxu0 0.0
    %349 = vmatprep.subr.mxu0 0.0
    %350 = vmatpush1.msra.mxu0 0.0
    %351 = vmatprep.subr.mxu0 0.0
    %352 = vmatpush1.msra.mxu0 0.0
    %353 = vmatprep.subr.mxu0 0.0
    %354 = vmatpush1.msra.mxu0 0.0
    %355 = vmatprep.subr.mxu0 0.0
    %356 = vmatpush1.msra.mxu0 0.0
    %357 = vmatprep.subr.mxu0 0.0
    %358 = vmatpush1.msra.mxu0 0.0
    %359 = vmatprep.subr.mxu0 0.0
    %360 = vmatpush1.msra.mxu0 0.0
    %361 = vmatprep.subr.mxu0 0.0
    %362 = vmatpush1.msra.mxu0 0.0
    %363 = vmatprep.subr.mxu0 0.0
    %364 = vmatpush1.msra.mxu0 0.0
    %365 = vmatprep.subr.mxu0 0.0
    %366 = vmatpush1.msra.mxu0 %v34
    %367 = vmatprep.subr.mxu0 0.0
    %368 = vmatpush1.msra.mxu0 %v33
    %369 = vmatprep.subr.mxu0 0.0
    %370 = vmatpush2.msra.mxu0 0.0
    %371 = vmatprep.subr.mxu0 0.0
    %372 = vmatpush2.msra.mxu0 0.0
    %373 = vmatprep.subr.mxu0 0.0
    %374 = vmatpush2.msra.mxu0 0.0
    %375 = vmatprep.subr.mxu0 0.0
    %376 = vmatpush2.msra.mxu0 0.0
    %377 = vmatprep.subr.mxu0 0.0
    %378 = vmatpush2.msra.mxu0 0.0
    %379 = vmatprep.subr.mxu0 0.0
    %380 = vmatpush2.msra.mxu0 0.0
    %381 = vmatprep.subr.mxu0 0.0
    %382 = vmatpush2.msra.mxu0 0.0
    %383 = vmatprep.subr.mxu0 0.0
    %384 = vmatpush2.msra.mxu0 0.0
    %385 = vmatprep.subr.mxu0 0.0
    %386 = vmatpush2.msra.mxu0 0.0
    %387 = vmatprep.subr.mxu0 0.0
    %388 = vmatpush2.msra.mxu0 0.0
    %389 = vmatprep.subr.mxu0 0.0
    %390 = vmatpush2.msra.mxu0 0.0
    %391 = vmatprep.subr.mxu0 0.0
    %392 = vmatpush2.msra.mxu0 0.0
    %393 = vmatprep.subr.mxu0 0.0
    %394 = vmatpush2.msra.mxu0 0.0
    %395 = vmatprep.subr.mxu0 0.0
    %396 = vmatpush2.msra.mxu0 0.0
    %397 = vmatprep.subr.mxu0 0.0
    %398 = vmatpush2.msra.mxu0 0.0
    %399 = vmatprep.subr.mxu0 0.0
    %400 = vmatpush2.msra.mxu0 0.0
    %401 = vmatprep.mubr.f32.mxu0 0.0
    %402 = vmatmul.mubr.f32.gmra.mxu0 %v326
    %v403 = vpop.f32.mrf.mxu0
    %v404 = vadd.f32 0.0, %v403
    %v405 = vpop.f32.mrf.mxu0
    %406 = vmatprep.mubr.f32.mxu0 0.0
    %407 = vmatmul.mubr.f32.gmra.mxu0 %v329
    %v408 = vpop.f32.mrf.mxu0
    %v409 = vadd.f32 0.0, %v408
    %v410 = vpop.f32.mrf.mxu0
    %411 = vmatprep.mubr.f32.mxu0 0.0
    %412 = vmatmul.mubr.f32.gmra.mxu0 %v332
    %v413 = vpop.f32.mrf.mxu0
    %v414 = vadd.f32 0.0, %v413
    %v415 = vpop.f32.mrf.mxu0
    %416 = vmatprep.mubr.f32.mxu0 0.0
    %417 = vmatmul.mubr.f32.gmra.mxu0 %v335
    %v418 = vpop.f32.mrf.mxu0
    %v419 = vadd.f32 0.0, %v418
    %v420 = vpop.f32.mrf.mxu0
    %421 = vdwg.mxu0
    %s422 = scalar_lea.vmem [#allocation5], 32
    %423 = vst.msk [vmem:[%s422] sm:$0xff] %vm232, %v404
    %424 = vst.msk [vmem:[%s422 + $0x8] sm:$0xff] %vm232, %v409
    %425 = vst.msk [vmem:[%s422 + $0x10] sm:$0xff] %vm232, %v414
    %426 = vst.msk [vmem:[%s422 + $0x18] sm:$0xff] %vm232, %v419
    %s427 = scalar_lea.vmem [#allocation2], 32
    %v428 = vld [vmem:[%s427] sm:$0xff]
    %v429 = vld [vmem:[%s427 + $0x8] sm:$0xff]
    %430 = vmatprep.subr.mxu0 0.0
    %431 = vmatpush1.msra.mxu0 0.0
    %432 = vmatprep.subr.mxu0 0.0
    %433 = vmatpush1.msra.mxu0 0.0
    %434 = vmatprep.subr.mxu0 0.0
    %435 = vmatpush1.msra.mxu0 0.0
    %436 = vmatprep.subr.mxu0 0.0
    %437 = vmatpush1.msra.mxu0 0.0
    %438 = vmatprep.subr.mxu0 0.0
    %439 = vmatpush1.msra.mxu0 0.0
    %440 = vmatprep.subr.mxu0 0.0
    %441 = vmatpush1.msra.mxu0 0.0
    %442 = vmatprep.subr.mxu0 0.0
    %443 = vmatpush1.msra.mxu0 0.0
    %444 = vmatprep.subr.mxu0 0.0
    %445 = vmatpush1.msra.mxu0 0.0
    %446 = vmatprep.subr.mxu0 0.0
    %447 = vmatpush1.msra.mxu0 0.0
    %448 = vmatprep.subr.mxu0 0.0
    %449 = vmatpush1.msra.mxu0 0.0
    %450 = vmatprep.subr.mxu0 0.0
    %451 = vmatpush1.msra.mxu0 0.0
    %452 = vmatprep.subr.mxu0 0.0
    %453 = vmatpush1.msra.mxu0 0.0
    %454 = vmatprep.subr.mxu0 0.0
    %455 = vmatpush1.msra.mxu0 0.0
    %456 = vmatprep.subr.mxu0 0.0
    %457 = vmatpush1.msra.mxu0 0.0
    %458 = vmatprep.subr.mxu0 0.0
    %459 = vmatpush1.msra.mxu0 %v429
    %460 = vmatprep.subr.mxu0 0.0
    %461 = vmatpush1.msra.mxu0 %v428
    %462 = vmatprep.subr.mxu0 0.0
    %463 = vmatpush2.msra.mxu0 0.0
    %464 = vmatprep.subr.mxu0 0.0
    %465 = vmatpush2.msra.mxu0 0.0
    %466 = vmatprep.subr.mxu0 0.0
    %467 = vmatpush2.msra.mxu0 0.0
    %468 = vmatprep.subr.mxu0 0.0
    %469 = vmatpush2.msra.mxu0 0.0
    %470 = vmatprep.subr.mxu0 0.0
    %471 = vmatpush2.msra.mxu0 0.0
    %472 = vmatprep.subr.mxu0 0.0
    %473 = vmatpush2.msra.mxu0 0.0
    %474 = vmatprep.subr.mxu0 0.0
    %475 = vmatpush2.msra.mxu0 0.0
    %476 = vmatprep.subr.mxu0 0.0
    %477 = vmatpush2.msra.mxu0 0.0
    %478 = vmatprep.subr.mxu0 0.0
    %479 = vmatpush2.msra.mxu0 0.0
    %480 = vmatprep.subr.mxu0 0.0
    %481 = vmatpush2.msra.mxu0 0.0
    %482 = vmatprep.subr.mxu0 0.0
    %483 = vmatpush2.msra.mxu0 0.0
    %484 = vmatprep.subr.mxu0 0.0
    %485 = vmatpush2.msra.mxu0 0.0
    %486 = vmatprep.subr.mxu0 0.0
    %487 = vmatpush2.msra.mxu0 0.0
    %488 = vmatprep.subr.mxu0 0.0
    %489 = vmatpush2.msra.mxu0 0.0
    %490 = vmatprep.subr.mxu0 0.0
    %491 = vmatpush2.msra.mxu0 0.0
    %492 = vmatprep.subr.mxu0 0.0
    %493 = vmatpush2.msra.mxu0 0.0
    %494 = vmatprep.mubr.f32.mxu0 0.0
    %495 = vmatmul.mubr.f32.gmra.mxu0 %v39
    %v496 = vpop.f32.mrf.mxu0
    %v497 = vadd.f32 0.0, %v496
    %v498 = vpop.f32.mrf.mxu0
    %499 = vmatprep.mubr.f32.mxu0 0.0
    %500 = vmatmul.mubr.f32.gmra.mxu0 %v42
    %v501 = vpop.f32.mrf.mxu0
    %v502 = vadd.f32 0.0, %v501
    %v503 = vpop.f32.mrf.mxu0
    %504 = vmatprep.mubr.f32.mxu0 0.0
    %505 = vmatmul.mubr.f32.gmra.mxu0 %v45
    %v506 = vpop.f32.mrf.mxu0
    %v507 = vadd.f32 0.0, %v506
    %v508 = vpop.f32.mrf.mxu0
    %509 = vmatprep.mubr.f32.mxu0 0.0
    %510 = vmatmul.mubr.f32.gmra.mxu0 %v48
    %v511 = vpop.f32.mrf.mxu0
    %v512 = vadd.f32 0.0, %v511
    %v513 = vpop.f32.mrf.mxu0
    %514 = vdwg.mxu0
    %v516 = vsel %vm37, %v497, 0
    %v519 = vsel %vm37, %v502, 0
    %v522 = vsel %vm37, %v507, 0
    %v525 = vsel %vm37, %v512, 0
    %527 = vmatprep.subr.mxu0 0.0
    %528 = vmatpush1.msra.mxu0 0.0
    %529 = vmatprep.subr.mxu0 0.0
    %530 = vmatpush1.msra.mxu0 0.0
    %531 = vmatprep.subr.mxu0 0.0
    %532 = vmatpush1.msra.mxu0 0.0
    %533 = vmatprep.subr.mxu0 0.0
    %534 = vmatpush1.msra.mxu0 0.0
    %535 = vmatprep.subr.mxu0 0.0
    %536 = vmatpush1.msra.mxu0 0.0
    %537 = vmatprep.subr.mxu0 0.0
    %538 = vmatpush1.msra.mxu0 0.0
    %539 = vmatprep.subr.mxu0 0.0
    %540 = vmatpush1.msra.mxu0 0.0
    %541 = vmatprep.subr.mxu0 0.0
    %542 = vmatpush1.msra.mxu0 0.0
    %543 = vmatprep.subr.mxu0 0.0
    %544 = vmatpush1.msra.mxu0 0.0
    %545 = vmatprep.subr.mxu0 0.0
    %546 = vmatpush1.msra.mxu0 0.0
    %547 = vmatprep.subr.mxu0 0.0
    %548 = vmatpush1.msra.mxu0 0.0
    %549 = vmatprep.subr.mxu0 0.0
    %550 = vmatpush1.msra.mxu0 0.0
    %551 = vmatprep.subr.mxu0 0.0
    %552 = vmatpush1.msra.mxu0 0.0
    %553 = vmatprep.subr.mxu0 0.0
    %554 = vmatpush1.msra.mxu0 0.0
    %555 = vmatprep.subr.mxu0 0.0
    %556 = vmatpush1.msra.mxu0 %v34
    %557 = vmatprep.subr.mxu0 0.0
    %558 = vmatpush1.msra.mxu0 %v33
    %559 = vmatprep.subr.mxu0 0.0
    %560 = vmatpush2.msra.mxu0 0.0
    %561 = vmatprep.subr.mxu0 0.0
    %562 = vmatpush2.msra.mxu0 0.0
    %563 = vmatprep.subr.mxu0 0.0
    %564 = vmatpush2.msra.mxu0 0.0
    %565 = vmatprep.subr.mxu0 0.0
    %566 = vmatpush2.msra.mxu0 0.0
    %567 = vmatprep.subr.mxu0 0.0
    %568 = vmatpush2.msra.mxu0 0.0
    %569 = vmatprep.subr.mxu0 0.0
    %570 = vmatpush2.msra.mxu0 0.0
    %571 = vmatprep.subr.mxu0 0.0
    %572 = vmatpush2.msra.mxu0 0.0
    %573 = vmatprep.subr.mxu0 0.0
    %574 = vmatpush2.msra.mxu0 0.0
    %575 = vmatprep.subr.mxu0 0.0
    %576 = vmatpush2.msra.mxu0 0.0
    %577 = vmatprep.subr.mxu0 0.0
    %578 = vmatpush2.msra.mxu0 0.0
    %579 = vmatprep.subr.mxu0 0.0
    %580 = vmatpush2.msra.mxu0 0.0
    %581 = vmatprep.subr.mxu0 0.0
    %582 = vmatpush2.msra.mxu0 0.0
    %583 = vmatprep.subr.mxu0 0.0
    %584 = vmatpush2.msra.mxu0 0.0
    %585 = vmatprep.subr.mxu0 0.0
    %586 = vmatpush2.msra.mxu0 0.0
    %587 = vmatprep.subr.mxu0 0.0
    %588 = vmatpush2.msra.mxu0 0.0
    %589 = vmatprep.subr.mxu0 0.0
    %590 = vmatpush2.msra.mxu0 0.0
    %591 = vmatprep.mubr.f32.mxu0 0.0
    %592 = vmatmul.mubr.f32.gmra.mxu0 %v516
    %v593 = vpop.f32.mrf.mxu0
    %v594 = vadd.f32 0.0, %v593
    %v595 = vpop.f32.mrf.mxu0
    %596 = vmatprep.mubr.f32.mxu0 0.0
    %597 = vmatmul.mubr.f32.gmra.mxu0 %v519
    %v598 = vpop.f32.mrf.mxu0
    %v599 = vadd.f32 0.0, %v598
    %v600 = vpop.f32.mrf.mxu0
    %601 = vmatprep.mubr.f32.mxu0 0.0
    %602 = vmatmul.mubr.f32.gmra.mxu0 %v522
    %v603 = vpop.f32.mrf.mxu0
    %v604 = vadd.f32 0.0, %v603
    %v605 = vpop.f32.mrf.mxu0
    %606 = vmatprep.mubr.f32.mxu0 0.0
    %607 = vmatmul.mubr.f32.gmra.mxu0 %v525
    %v608 = vpop.f32.mrf.mxu0
    %v609 = vadd.f32 0.0, %v608
    %v610 = vpop.f32.mrf.mxu0
    %611 = vdwg.mxu0
    %s612 = scalar_lea.vmem [#allocation5], 64
    %613 = vst.msk [vmem:[%s612] sm:$0xff] %vm232, %v594
    %614 = vst.msk [vmem:[%s612 + $0x8] sm:$0xff] %vm232, %v599
    %615 = vst.msk [vmem:[%s612 + $0x10] sm:$0xff] %vm232, %v604
    %616 = vst.msk [vmem:[%s612 + $0x18] sm:$0xff] %vm232, %v609
    %s617 = scalar_lea.vmem [#allocation2], 48
    %v618 = vld [vmem:[%s617] sm:$0xff]
    %v619 = vld [vmem:[%s617 + $0x8] sm:$0xff]
    %620 = vmatprep.subr.mxu0 0.0
    %621 = vmatpush1.msra.mxu0 0.0
    %622 = vmatprep.subr.mxu0 0.0
    %623 = vmatpush1.msra.mxu0 0.0
    %624 = vmatprep.subr.mxu0 0.0
    %625 = vmatpush1.msra.mxu0 0.0
    %626 = vmatprep.subr.mxu0 0.0
    %627 = vmatpush1.msra.mxu0 0.0
    %628 = vmatprep.subr.mxu0 0.0
    %629 = vmatpush1.msra.mxu0 0.0
    %630 = vmatprep.subr.mxu0 0.0
    %631 = vmatpush1.msra.mxu0 0.0
    %632 = vmatprep.subr.mxu0 0.0
    %633 = vmatpush1.msra.mxu0 0.0
    %634 = vmatprep.subr.mxu0 0.0
    %635 = vmatpush1.msra.mxu0 0.0
    %636 = vmatprep.subr.mxu0 0.0
    %637 = vmatpush1.msra.mxu0 0.0
    %638 = vmatprep.subr.mxu0 0.0
    %639 = vmatpush1.msra.mxu0 0.0
    %640 = vmatprep.subr.mxu0 0.0
    %641 = vmatpush1.msra.mxu0 0.0
    %642 = vmatprep.subr.mxu0 0.0
    %643 = vmatpush1.msra.mxu0 0.0
    %644 = vmatprep.subr.mxu0 0.0
    %645 = vmatpush1.msra.mxu0 0.0
    %646 = vmatprep.subr.mxu0 0.0
    %647 = vmatpush1.msra.mxu0 0.0
    %648 = vmatprep.subr.mxu0 0.0
    %649 = vmatpush1.msra.mxu0 %v619
    %650 = vmatprep.subr.mxu0 0.0
    %651 = vmatpush1.msra.mxu0 %v618
    %652 = vmatprep.subr.mxu0 0.0
    %653 = vmatpush2.msra.mxu0 0.0
    %654 = vmatprep.subr.mxu0 0.0
    %655 = vmatpush2.msra.mxu0 0.0
    %656 = vmatprep.subr.mxu0 0.0
    %657 = vmatpush2.msra.mxu0 0.0
    %658 = vmatprep.subr.mxu0 0.0
    %659 = vmatpush2.msra.mxu0 0.0
    %660 = vmatprep.subr.mxu0 0.0
    %661 = vmatpush2.msra.mxu0 0.0
    %662 = vmatprep.subr.mxu0 0.0
    %663 = vmatpush2.msra.mxu0 0.0
    %664 = vmatprep.subr.mxu0 0.0
    %665 = vmatpush2.msra.mxu0 0.0
    %666 = vmatprep.subr.mxu0 0.0
    %667 = vmatpush2.msra.mxu0 0.0
    %668 = vmatprep.subr.mxu0 0.0
    %669 = vmatpush2.msra.mxu0 0.0
    %670 = vmatprep.subr.mxu0 0.0
    %671 = vmatpush2.msra.mxu0 0.0
    %672 = vmatprep.subr.mxu0 0.0
    %673 = vmatpush2.msra.mxu0 0.0
    %674 = vmatprep.subr.mxu0 0.0
    %675 = vmatpush2.msra.mxu0 0.0
    %676 = vmatprep.subr.mxu0 0.0
    %677 = vmatpush2.msra.mxu0 0.0
    %678 = vmatprep.subr.mxu0 0.0
    %679 = vmatpush2.msra.mxu0 0.0
    %680 = vmatprep.subr.mxu0 0.0
    %681 = vmatpush2.msra.mxu0 0.0
    %682 = vmatprep.subr.mxu0 0.0
    %683 = vmatpush2.msra.mxu0 0.0
    %684 = vmatprep.mubr.f32.mxu0 0.0
    %685 = vmatmul.mubr.f32.gmra.mxu0 %v39
    %v686 = vpop.f32.mrf.mxu0
    %v687 = vadd.f32 0.0, %v686
    %v688 = vpop.f32.mrf.mxu0
    %689 = vmatprep.mubr.f32.mxu0 0.0
    %690 = vmatmul.mubr.f32.gmra.mxu0 %v42
    %v691 = vpop.f32.mrf.mxu0
    %v692 = vadd.f32 0.0, %v691
    %v693 = vpop.f32.mrf.mxu0
    %694 = vmatprep.mubr.f32.mxu0 0.0
    %695 = vmatmul.mubr.f32.gmra.mxu0 %v45
    %v696 = vpop.f32.mrf.mxu0
    %v697 = vadd.f32 0.0, %v696
    %v698 = vpop.f32.mrf.mxu0
    %699 = vmatprep.mubr.f32.mxu0 0.0
    %700 = vmatmul.mubr.f32.gmra.mxu0 %v48
    %v701 = vpop.f32.mrf.mxu0
    %v702 = vadd.f32 0.0, %v701
    %v703 = vpop.f32.mrf.mxu0
    %704 = vdwg.mxu0
    %v706 = vsel %vm37, %v687, 0
    %v709 = vsel %vm37, %v692, 0
    %v712 = vsel %vm37, %v697, 0
    %v715 = vsel %vm37, %v702, 0
    %717 = vmatprep.subr.mxu0 0.0
    %718 = vmatpush1.msra.mxu0 0.0
    %719 = vmatprep.subr.mxu0 0.0
    %720 = vmatpush1.msra.mxu0 0.0
    %721 = vmatprep.subr.mxu0 0.0
    %722 = vmatpush1.msra.mxu0 0.0
    %723 = vmatprep.subr.mxu0 0.0
    %724 = vmatpush1.msra.mxu0 0.0
    %725 = vmatprep.subr.mxu0 0.0
    %726 = vmatpush1.msra.mxu0 0.0
    %727 = vmatprep.subr.mxu0 0.0
    %728 = vmatpush1.msra.mxu0 0.0
    %729 = vmatprep.subr.mxu0 0.0
    %730 = vmatpush1.msra.mxu0 0.0
    %731 = vmatprep.subr.mxu0 0.0
    %732 = vmatpush1.msra.mxu0 0.0
    %733 = vmatprep.subr.mxu0 0.0
    %734 = vmatpush1.msra.mxu0 0.0
    %735 = vmatprep.subr.mxu0 0.0
    %736 = vmatpush1.msra.mxu0 0.0
    %737 = vmatprep.subr.mxu0 0.0
    %738 = vmatpush1.msra.mxu0 0.0
    %739 = vmatprep.subr.mxu0 0.0
    %740 = vmatpush1.msra.mxu0 0.0
    %741 = vmatprep.subr.mxu0 0.0
    %742 = vmatpush1.msra.mxu0 0.0
    %743 = vmatprep.subr.mxu0 0.0
    %744 = vmatpush1.msra.mxu0 0.0
    %745 = vmatprep.subr.mxu0 0.0
    %746 = vmatpush1.msra.mxu0 %v34
    %747 = vmatprep.subr.mxu0 0.0
    %748 = vmatpush1.msra.mxu0 %v33
    %749 = vmatprep.subr.mxu0 0.0
    %750 = vmatpush2.msra.mxu0 0.0
    %751 = vmatprep.subr.mxu0 0.0
    %752 = vmatpush2.msra.mxu0 0.0
    %753 = vmatprep.subr.mxu0 0.0
    %754 = vmatpush2.msra.mxu0 0.0
    %755 = vmatprep.subr.mxu0 0.0
    %756 = vmatpush2.msra.mxu0 0.0
    %757 = vmatprep.subr.mxu0 0.0
    %758 = vmatpush2.msra.mxu0 0.0
    %759 = vmatprep.subr.mxu0 0.0
    %760 = vmatpush2.msra.mxu0 0.0
    %761 = vmatprep.subr.mxu0 0.0
    %762 = vmatpush2.msra.mxu0 0.0
    %763 = vmatprep.subr.mxu0 0.0
    %764 = vmatpush2.msra.mxu0 0.0
    %765 = vmatprep.subr.mxu0 0.0
    %766 = vmatpush2.msra.mxu0 0.0
    %767 = vmatprep.subr.mxu0 0.0
    %768 = vmatpush2.msra.mxu0 0.0
    %769 = vmatprep.subr.mxu0 0.0
    %770 = vmatpush2.msra.mxu0 0.0
    %771 = vmatprep.subr.mxu0 0.0
    %772 = vmatpush2.msra.mxu0 0.0
    %773 = vmatprep.subr.mxu0 0.0
    %774 = vmatpush2.msra.mxu0 0.0
    %775 = vmatprep.subr.mxu0 0.0
    %776 = vmatpush2.msra.mxu0 0.0
    %777 = vmatprep.subr.mxu0 0.0
    %778 = vmatpush2.msra.mxu0 0.0
    %779 = vmatprep.subr.mxu0 0.0
    %780 = vmatpush2.msra.mxu0 0.0
    %781 = vmatprep.mubr.f32.mxu0 0.0
    %782 = vmatmul.mubr.f32.gmra.mxu0 %v706
    %v783 = vpop.f32.mrf.mxu0
    %v784 = vadd.f32 0.0, %v783
    %v785 = vpop.f32.mrf.mxu0
    %786 = vmatprep.mubr.f32.mxu0 0.0
    %787 = vmatmul.mubr.f32.gmra.mxu0 %v709
    %v788 = vpop.f32.mrf.mxu0
    %v789 = vadd.f32 0.0, %v788
    %v790 = vpop.f32.mrf.mxu0
    %791 = vmatprep.mubr.f32.mxu0 0.0
    %792 = vmatmul.mubr.f32.gmra.mxu0 %v712
    %v793 = vpop.f32.mrf.mxu0
    %v794 = vadd.f32 0.0, %v793
    %v795 = vpop.f32.mrf.mxu0
    %796 = vmatprep.mubr.f32.mxu0 0.0
    %797 = vmatmul.mubr.f32.gmra.mxu0 %v715
    %v798 = vpop.f32.mrf.mxu0
    %v799 = vadd.f32 0.0, %v798
    %v800 = vpop.f32.mrf.mxu0
    %801 = vdwg.mxu0
    %s802 = scalar_lea.vmem [#allocation5], 96
    %803 = vst.msk [vmem:[%s802] sm:$0xff] %vm232, %v784
    %804 = vst.msk [vmem:[%s802 + $0x8] sm:$0xff] %vm232, %v789
    %805 = vst.msk [vmem:[%s802 + $0x10] sm:$0xff] %vm232, %v794
    %806 = vst.msk [vmem:[%s802 + $0x18] sm:$0xff] %vm232, %v799
    %s807 = scalar_lea.vmem [#allocation2], 64
    %v808 = vld [vmem:[%s807] sm:$0xff]
    %v809 = vld [vmem:[%s807 + $0x8] sm:$0xff]
    %810 = vmatprep.subr.mxu0 0.0
    %811 = vmatpush1.msra.mxu0 0.0
    %812 = vmatprep.subr.mxu0 0.0
    %813 = vmatpush1.msra.mxu0 0.0
    %814 = vmatprep.subr.mxu0 0.0
    %815 = vmatpush1.msra.mxu0 0.0
    %816 = vmatprep.subr.mxu0 0.0
    %817 = vmatpush1.msra.mxu0 0.0
    %818 = vmatprep.subr.mxu0 0.0
    %819 = vmatpush1.msra.mxu0 0.0
    %820 = vmatprep.subr.mxu0 0.0
    %821 = vmatpush1.msra.mxu0 0.0
    %822 = vmatprep.subr.mxu0 0.0
    %823 = vmatpush1.msra.mxu0 0.0
    %824 = vmatprep.subr.mxu0 0.0
    %825 = vmatpush1.msra.mxu0 0.0
    %826 = vmatprep.subr.mxu0 0.0
    %827 = vmatpush1.msra.mxu0 0.0
    %828 = vmatprep.subr.mxu0 0.0
    %829 = vmatpush1.msra.mxu0 0.0
    %830 = vmatprep.subr.mxu0 0.0
    %831 = vmatpush1.msra.mxu0 0.0
    %832 = vmatprep.subr.mxu0 0.0
    %833 = vmatpush1.msra.mxu0 0.0
    %834 = vmatprep.subr.mxu0 0.0
    %835 = vmatpush1.msra.mxu0 0.0
    %836 = vmatprep.subr.mxu0 0.0
    %837 = vmatpush1.msra.mxu0 0.0
    %838 = vmatprep.subr.mxu0 0.0
    %839 = vmatpush1.msra.mxu0 %v809
    %840 = vmatprep.subr.mxu0 0.0
    %841 = vmatpush1.msra.mxu0 %v808
    %842 = vmatprep.subr.mxu0 0.0
    %843 = vmatpush2.msra.mxu0 0.0
    %844 = vmatprep.subr.mxu0 0.0
    %845 = vmatpush2.msra.mxu0 0.0
    %846 = vmatprep.subr.mxu0 0.0
    %847 = vmatpush2.msra.mxu0 0.0
    %848 = vmatprep.subr.mxu0 0.0
    %849 = vmatpush2.msra.mxu0 0.0
    %850 = vmatprep.subr.mxu0 0.0
    %851 = vmatpush2.msra.mxu0 0.0
    %852 = vmatprep.subr.mxu0 0.0
    %853 = vmatpush2.msra.mxu0 0.0
    %854 = vmatprep.subr.mxu0 0.0
    %855 = vmatpush2.msra.mxu0 0.0
    %856 = vmatprep.subr.mxu0 0.0
    %857 = vmatpush2.msra.mxu0 0.0
    %858 = vmatprep.subr.mxu0 0.0
    %859 = vmatpush2.msra.mxu0 0.0
    %860 = vmatprep.subr.mxu0 0.0
    %861 = vmatpush2.msra.mxu0 0.0
    %862 = vmatprep.subr.mxu0 0.0
    %863 = vmatpush2.msra.mxu0 0.0
    %864 = vmatprep.subr.mxu0 0.0
    %865 = vmatpush2.msra.mxu0 0.0
    %866 = vmatprep.subr.mxu0 0.0
    %867 = vmatpush2.msra.mxu0 0.0
    %868 = vmatprep.subr.mxu0 0.0
    %869 = vmatpush2.msra.mxu0 0.0
    %870 = vmatprep.subr.mxu0 0.0
    %871 = vmatpush2.msra.mxu0 0.0
    %872 = vmatprep.subr.mxu0 0.0
    %873 = vmatpush2.msra.mxu0 0.0
    %874 = vmatprep.mubr.f32.mxu0 0.0
    %875 = vmatmul.mubr.f32.gmra.mxu0 %v39
    %v876 = vpop.f32.mrf.mxu0
    %v877 = vadd.f32 0.0, %v876
    %v878 = vpop.f32.mrf.mxu0
    %879 = vmatprep.mubr.f32.mxu0 0.0
    %880 = vmatmul.mubr.f32.gmra.mxu0 %v42
    %v881 = vpop.f32.mrf.mxu0
    %v882 = vadd.f32 0.0, %v881
    %v883 = vpop.f32.mrf.mxu0
    %884 = vmatprep.mubr.f32.mxu0 0.0
    %885 = vmatmul.mubr.f32.gmra.mxu0 %v45
    %v886 = vpop.f32.mrf.mxu0
    %v887 = vadd.f32 0.0, %v886
    %v888 = vpop.f32.mrf.mxu0
    %889 = vmatprep.mubr.f32.mxu0 0.0
    %890 = vmatmul.mubr.f32.gmra.mxu0 %v48
    %v891 = vpop.f32.mrf.mxu0
    %v892 = vadd.f32 0.0, %v891
    %v893 = vpop.f32.mrf.mxu0
    %894 = vdwg.mxu0
    %v896 = vsel %vm37, %v877, 0
    %v899 = vsel %vm37, %v882, 0
    %v902 = vsel %vm37, %v887, 0
    %v905 = vsel %vm37, %v892, 0
    %907 = vmatprep.subr.mxu0 0.0
    %908 = vmatpush1.msra.mxu0 0.0
    %909 = vmatprep.subr.mxu0 0.0
    %910 = vmatpush1.msra.mxu0 0.0
    %911 = vmatprep.subr.mxu0 0.0
    %912 = vmatpush1.msra.mxu0 0.0
    %913 = vmatprep.subr.mxu0 0.0
    %914 = vmatpush1.msra.mxu0 0.0
    %915 = vmatprep.subr.mxu0 0.0
    %916 = vmatpush1.msra.mxu0 0.0
    %917 = vmatprep.subr.mxu0 0.0
    %918 = vmatpush1.msra.mxu0 0.0
    %919 = vmatprep.subr.mxu0 0.0
    %920 = vmatpush1.msra.mxu0 0.0
    %921 = vmatprep.subr.mxu0 0.0
    %922 = vmatpush1.msra.mxu0 0.0
    %923 = vmatprep.subr.mxu0 0.0
    %924 = vmatpush1.msra.mxu0 0.0
    %925 = vmatprep.subr.mxu0 0.0
    %926 = vmatpush1.msra.mxu0 0.0
    %927 = vmatprep.subr.mxu0 0.0
    %928 = vmatpush1.msra.mxu0 0.0
    %929 = vmatprep.subr.mxu0 0.0
    %930 = vmatpush1.msra.mxu0 0.0
    %931 = vmatprep.subr.mxu0 0.0
    %932 = vmatpush1.msra.mxu0 0.0
    %933 = vmatprep.subr.mxu0 0.0
    %934 = vmatpush1.msra.mxu0 0.0
    %935 = vmatprep.subr.mxu0 0.0
    %936 = vmatpush1.msra.mxu0 %v34
    %937 = vmatprep.subr.mxu0 0.0
    %938 = vmatpush1.msra.mxu0 %v33
    %939 = vmatprep.subr.mxu0 0.0
    %940 = vmatpush2.msra.mxu0 0.0
    %941 = vmatprep.subr.mxu0 0.0
    %942 = vmatpush2.msra.mxu0 0.0
    %943 = vmatprep.subr.mxu0 0.0
    %944 = vmatpush2.msra.mxu0 0.0
    %945 = vmatprep.subr.mxu0 0.0
    %946 = vmatpush2.msra.mxu0 0.0
    %947 = vmatprep.subr.mxu0 0.0
    %948 = vmatpush2.msra.mxu0 0.0
    %949 = vmatprep.subr.mxu0 0.0
    %950 = vmatpush2.msra.mxu0 0.0
    %951 = vmatprep.subr.mxu0 0.0
    %952 = vmatpush2.msra.mxu0 0.0
    %953 = vmatprep.subr.mxu0 0.0
    %954 = vmatpush2.msra.mxu0 0.0
    %955 = vmatprep.subr.mxu0 0.0
    %956 = vmatpush2.msra.mxu0 0.0
    %957 = vmatprep.subr.mxu0 0.0
    %958 = vmatpush2.msra.mxu0 0.0
    %959 = vmatprep.subr.mxu0 0.0
    %960 = vmatpush2.msra.mxu0 0.0
    %961 = vmatprep.subr.mxu0 0.0
    %962 = vmatpush2.msra.mxu0 0.0
    %963 = vmatprep.subr.mxu0 0.0
    %964 = vmatpush2.msra.mxu0 0.0
    %965 = vmatprep.subr.mxu0 0.0
    %966 = vmatpush2.msra.mxu0 0.0
    %967 = vmatprep.subr.mxu0 0.0
    %968 = vmatpush2.msra.mxu0 0.0
    %969 = vmatprep.subr.mxu0 0.0
    %970 = vmatpush2.msra.mxu0 0.0
    %971 = vmatprep.mubr.f32.mxu0 0.0
    %972 = vmatmul.mubr.f32.gmra.mxu0 %v896
    %v973 = vpop.f32.mrf.mxu0
    %v974 = vadd.f32 0.0, %v973
    %v975 = vpop.f32.mrf.mxu0
    %976 = vmatprep.mubr.f32.mxu0 0.0
    %977 = vmatmul.mubr.f32.gmra.mxu0 %v899
    %v978 = vpop.f32.mrf.mxu0
    %v979 = vadd.f32 0.0, %v978
    %v980 = vpop.f32.mrf.mxu0
    %981 = vmatprep.mubr.f32.mxu0 0.0
    %982 = vmatmul.mubr.f32.gmra.mxu0 %v902
    %v983 = vpop.f32.mrf.mxu0
    %v984 = vadd.f32 0.0, %v983
    %v985 = vpop.f32.mrf.mxu0
    %986 = vmatprep.mubr.f32.mxu0 0.0
    %987 = vmatmul.mubr.f32.gmra.mxu0 %v905
    %v988 = vpop.f32.mrf.mxu0
    %v989 = vadd.f32 0.0, %v988
    %v990 = vpop.f32.mrf.mxu0
    %991 = vdwg.mxu0
    %s992 = scalar_lea.vmem [#allocation5], 128
    %993 = vst.msk [vmem:[%s992] sm:$0xff] %vm232, %v974
    %994 = vst.msk [vmem:[%s992 + $0x8] sm:$0xff] %vm232, %v979
    %995 = vst.msk [vmem:[%s992 + $0x10] sm:$0xff] %vm232, %v984
    %996 = vst.msk [vmem:[%s992 + $0x18] sm:$0xff] %vm232, %v989
    %s997 = scalar_lea.vmem [#allocation2], 80
    %v998 = vld [vmem:[%s997] sm:$0xff]
    %v999 = vld [vmem:[%s997 + $0x8] sm:$0xff]
    %1000 = vmatprep.subr.mxu0 0.0
    %1001 = vmatpush1.msra.mxu0 0.0
    %1002 = vmatprep.subr.mxu0 0.0
    %1003 = vmatpush1.msra.mxu0 0.0
    %1004 = vmatprep.subr.mxu0 0.0
    %1005 = vmatpush1.msra.mxu0 0.0
    %1006 = vmatprep.subr.mxu0 0.0
    %1007 = vmatpush1.msra.mxu0 0.0
    %1008 = vmatprep.subr.mxu0 0.0
    %1009 = vmatpush1.msra.mxu0 0.0
    %1010 = vmatprep.subr.mxu0 0.0
    %1011 = vmatpush1.msra.mxu0 0.0
    %1012 = vmatprep.subr.mxu0 0.0
    %1013 = vmatpush1.msra.mxu0 0.0
    %1014 = vmatprep.subr.mxu0 0.0
    %1015 = vmatpush1.msra.mxu0 0.0
    %1016 = vmatprep.subr.mxu0 0.0
    %1017 = vmatpush1.msra.mxu0 0.0
    %1018 = vmatprep.subr.mxu0 0.0
    %1019 = vmatpush1.msra.mxu0 0.0
    %1020 = vmatprep.subr.mxu0 0.0
    %1021 = vmatpush1.msra.mxu0 0.0
    %1022 = vmatprep.subr.mxu0 0.0
    %1023 = vmatpush1.msra.mxu0 0.0
    %1024 = vmatprep.subr.mxu0 0.0
    %1025 = vmatpush1.msra.mxu0 0.0
    %1026 = vmatprep.subr.mxu0 0.0
    %1027 = vmatpush1.msra.mxu0 0.0
    %1028 = vmatprep.subr.mxu0 0.0
    %1029 = vmatpush1.msra.mxu0 %v999
    %1030 = vmatprep.subr.mxu0 0.0
    %1031 = vmatpush1.msra.mxu0 %v998
    %1032 = vmatprep.subr.mxu0 0.0
    %1033 = vmatpush2.msra.mxu0 0.0
    %1034 = vmatprep.subr.mxu0 0.0
    %1035 = vmatpush2.msra.mxu0 0.0
    %1036 = vmatprep.subr.mxu0 0.0
    %1037 = vmatpush2.msra.mxu0 0.0
    %1038 = vmatprep.subr.mxu0 0.0
    %1039 = vmatpush2.msra.mxu0 0.0
    %1040 = vmatprep.subr.mxu0 0.0
    %1041 = vmatpush2.msra.mxu0 0.0
    %1042 = vmatprep.subr.mxu0 0.0
    %1043 = vmatpush2.msra.mxu0 0.0
    %1044 = vmatprep.subr.mxu0 0.0
    %1045 = vmatpush2.msra.mxu0 0.0
    %1046 = vmatprep.subr.mxu0 0.0
    %1047 = vmatpush2.msra.mxu0 0.0
    %1048 = vmatprep.subr.mxu0 0.0
    %1049 = vmatpush2.msra.mxu0 0.0
    %1050 = vmatprep.subr.mxu0 0.0
    %1051 = vmatpush2.msra.mxu0 0.0
    %1052 = vmatprep.subr.mxu0 0.0
    %1053 = vmatpush2.msra.mxu0 0.0
    %1054 = vmatprep.subr.mxu0 0.0
    %1055 = vmatpush2.msra.mxu0 0.0
    %1056 = vmatprep.subr.mxu0 0.0
    %1057 = vmatpush2.msra.mxu0 0.0
    %1058 = vmatprep.subr.mxu0 0.0
    %1059 = vmatpush2.msra.mxu0 0.0
    %1060 = vmatprep.subr.mxu0 0.0
    %1061 = vmatpush2.msra.mxu0 0.0
    %1062 = vmatprep.subr.mxu0 0.0
    %1063 = vmatpush2.msra.mxu0 0.0
    %1064 = vmatprep.mubr.f32.mxu0 0.0
    %1065 = vmatmul.mubr.f32.gmra.mxu0 %v39
    %v1066 = vpop.f32.mrf.mxu0
    %v1067 = vadd.f32 0.0, %v1066
    %v1068 = vpop.f32.mrf.mxu0
    %1069 = vmatprep.mubr.f32.mxu0 0.0
    %1070 = vmatmul.mubr.f32.gmra.mxu0 %v42
    %v1071 = vpop.f32.mrf.mxu0
    %v1072 = vadd.f32 0.0, %v1071
    %v1073 = vpop.f32.mrf.mxu0
    %1074 = vmatprep.mubr.f32.mxu0 0.0
    %1075 = vmatmul.mubr.f32.gmra.mxu0 %v45
    %v1076 = vpop.f32.mrf.mxu0
    %v1077 = vadd.f32 0.0, %v1076
    %v1078 = vpop.f32.mrf.mxu0
    %1079 = vmatprep.mubr.f32.mxu0 0.0
    %1080 = vmatmul.mubr.f32.gmra.mxu0 %v48
    %v1081 = vpop.f32.mrf.mxu0
    %v1082 = vadd.f32 0.0, %v1081
    %v1083 = vpop.f32.mrf.mxu0
    %1084 = vdwg.mxu0
    %v1086 = vsel %vm37, %v1067, 0
    %v1089 = vsel %vm37, %v1072, 0
    %v1092 = vsel %vm37, %v1077, 0
    %v1095 = vsel %vm37, %v1082, 0
    %1097 = vmatprep.subr.mxu0 0.0
    %1098 = vmatpush1.msra.mxu0 0.0
    %1099 = vmatprep.subr.mxu0 0.0
    %1100 = vmatpush1.msra.mxu0 0.0
    %1101 = vmatprep.subr.mxu0 0.0
    %1102 = vmatpush1.msra.mxu0 0.0
    %1103 = vmatprep.subr.mxu0 0.0
    %1104 = vmatpush1.msra.mxu0 0.0
    %1105 = vmatprep.subr.mxu0 0.0
    %1106 = vmatpush1.msra.mxu0 0.0
    %1107 = vmatprep.subr.mxu0 0.0
    %1108 = vmatpush1.msra.mxu0 0.0
    %1109 = vmatprep.subr.mxu0 0.0
    %1110 = vmatpush1.msra.mxu0 0.0
    %1111 = vmatprep.subr.mxu0 0.0
    %1112 = vmatpush1.msra.mxu0 0.0
    %1113 = vmatprep.subr.mxu0 0.0
    %1114 = vmatpush1.msra.mxu0 0.0
    %1115 = vmatprep.subr.mxu0 0.0
    %1116 = vmatpush1.msra.mxu0 0.0
    %1117 = vmatprep.subr.mxu0 0.0
    %1118 = vmatpush1.msra.mxu0 0.0
    %1119 = vmatprep.subr.mxu0 0.0
    %1120 = vmatpush1.msra.mxu0 0.0
    %1121 = vmatprep.subr.mxu0 0.0
    %1122 = vmatpush1.msra.mxu0 0.0
    %1123 = vmatprep.subr.mxu0 0.0
    %1124 = vmatpush1.msra.mxu0 0.0
    %1125 = vmatprep.subr.mxu0 0.0
    %1126 = vmatpush1.msra.mxu0 %v34
    %1127 = vmatprep.subr.mxu0 0.0
    %1128 = vmatpush1.msra.mxu0 %v33
    %1129 = vmatprep.subr.mxu0 0.0
    %1130 = vmatpush2.msra.mxu0 0.0
    %1131 = vmatprep.subr.mxu0 0.0
    %1132 = vmatpush2.msra.mxu0 0.0
    %1133 = vmatprep.subr.mxu0 0.0
    %1134 = vmatpush2.msra.mxu0 0.0
    %1135 = vmatprep.subr.mxu0 0.0
    %1136 = vmatpush2.msra.mxu0 0.0
    %1137 = vmatprep.subr.mxu0 0.0
    %1138 = vmatpush2.msra.mxu0 0.0
    %1139 = vmatprep.subr.mxu0 0.0
    %1140 = vmatpush2.msra.mxu0 0.0
    %1141 = vmatprep.subr.mxu0 0.0
    %1142 = vmatpush2.msra.mxu0 0.0
    %1143 = vmatprep.subr.mxu0 0.0
    %1144 = vmatpush2.msra.mxu0 0.0
    %1145 = vmatprep.subr.mxu0 0.0
    %1146 = vmatpush2.msra.mxu0 0.0
    %1147 = vmatprep.subr.mxu0 0.0
    %1148 = vmatpush2.msra.mxu0 0.0
    %1149 = vmatprep.subr.mxu0 0.0
    %1150 = vmatpush2.msra.mxu0 0.0
    %1151 = vmatprep.subr.mxu0 0.0
    %1152 = vmatpush2.msra.mxu0 0.0
    %1153 = vmatprep.subr.mxu0 0.0
    %1154 = vmatpush2.msra.mxu0 0.0
    %1155 = vmatprep.subr.mxu0 0.0
    %1156 = vmatpush2.msra.mxu0 0.0
    %1157 = vmatprep.subr.mxu0 0.0
    %1158 = vmatpush2.msra.mxu0 0.0
    %1159 = vmatprep.subr.mxu0 0.0
    %1160 = vmatpush2.msra.mxu0 0.0
    %1161 = vmatprep.mubr.f32.mxu0 0.0
    %1162 = vmatmul.mubr.f32.gmra.mxu0 %v1086
    %v1163 = vpop.f32.mrf.mxu0
    %v1164 = vadd.f32 0.0, %v1163
    %v1165 = vpop.f32.mrf.mxu0
    %1166 = vmatprep.mubr.f32.mxu0 0.0
    %1167 = vmatmul.mubr.f32.gmra.mxu0 %v1089
    %v1168 = vpop.f32.mrf.mxu0
    %v1169 = vadd.f32 0.0, %v1168
    %v1170 = vpop.f32.mrf.mxu0
    %1171 = vmatprep.mubr.f32.mxu0 0.0
    %1172 = vmatmul.mubr.f32.gmra.mxu0 %v1092
    %v1173 = vpop.f32.mrf.mxu0
    %v1174 = vadd.f32 0.0, %v1173
    %v1175 = vpop.f32.mrf.mxu0
    %1176 = vmatprep.mubr.f32.mxu0 0.0
    %1177 = vmatmul.mubr.f32.gmra.mxu0 %v1095
    %v1178 = vpop.f32.mrf.mxu0
    %v1179 = vadd.f32 0.0, %v1178
    %v1180 = vpop.f32.mrf.mxu0
    %1181 = vdwg.mxu0
    %s1182 = scalar_lea.vmem [#allocation5], 160
    %1183 = vst.msk [vmem:[%s1182] sm:$0xff] %vm232, %v1164
    %1184 = vst.msk [vmem:[%s1182 + $0x8] sm:$0xff] %vm232, %v1169
    %1185 = vst.msk [vmem:[%s1182 + $0x10] sm:$0xff] %vm232, %v1174
    %1186 = vst.msk [vmem:[%s1182 + $0x18] sm:$0xff] %vm232, %v1179
    // Predicated region
    $region18: #{tpu_custom_call.1} parent=1 // pred_check
      _
    $region19: #{tpu_custom_call.1} parent=1 // pred_check_branch
      %1188 = sbr.rel (0) target = $region21
    $region20: #{tpu_custom_call.1} parent=1 // pred_region
      %s1190 = ssub.s32 3072, 3072
      %1191 = vsyncadd [#allocation4], %s1190
      %s1192 = sshll.u32 [#allocation5], 4
      %s1193 = int_to_ptr.vmem [resolvable:$true] %s1192
      %1198 = dma.vmem_to_hbm [thread:$0]  %s1193, 3072, %s3, [#allocation4], 128, 128, 8
    $region21: #{tpu_custom_call.1} parent=1 // pred_fallthru
      _
    // Predicated region
    $region22: #{tpu_custom_call.1} parent=1 // pred_check
      _
    $region23: #{tpu_custom_call.1} parent=1 // pred_check_branch
      %1200 = sbr.rel (0) target = $region25
    $region24: #{tpu_custom_call.1} parent=1 // pred_region
      %1201 = dma.done [#allocation4], 3072
    $region25: #{tpu_custom_call.1} parent=1 // pred_fallthru
      _
    %1202 = vsyncpa [#allocation3], 1
    %1203 = vsyncpa [#allocation4], 1

</llo_original>
